<compile_context>
chip_gen: v7x
topology: tpu7x:2x2x1
jax: 0.10.0
libtpu: 0.0.40
codegen_flags: <defaults>
</compile_context>

<pallas_src>
import jax
import jax.numpy as jnp
from jax.experimental import pallas as pl
from jax.experimental.pallas import tpu as pltpu

IN_FEATURES = 256
N_CLASSES = 3


def linear_kernel(x_ref, w_ref, b_ref, o_ref):
    # x_ref: (TB, 256), w_ref: (256, 3), b_ref: (1, 3), o_ref: (TB, 3)
    acc = jnp.dot(x_ref[...], w_ref[...], preferred_element_type=jnp.float32)
    o_ref[...] = (acc + b_ref[...]).astype(o_ref.dtype)


def _round_up(v, m):
    return ((v + m - 1) // m) * m


def linear_model(x, w, b, *, tb=8192):
    """x: (B, 256) f32, w: (256, 3) f32, b: (3,) f32 -> (B, 3) f32"""
    B = x.shape[0]
    b2d = b.reshape(1, N_CLASSES)

    # Batch tile: sublane-aligned (multiple of 8), capped by tb, and capped so
    # the grid has >= 2 steps when B is large enough (feeds both TCs on v7x).
    TB = max(8, min(tb, _round_up(pl.cdiv(B, 2), 8)))
    grid = (pl.cdiv(B, TB),)

    itemsize = 4  # f32
    cost = pl.CostEstimate(
        flops=2 * B * IN_FEATURES * N_CLASSES,
        transcendentals=0,
        bytes_accessed=(B * IN_FEATURES + B * N_CLASSES
                        + IN_FEATURES * N_CLASSES + N_CLASSES) * itemsize,
    )

    out = pl.pallas_call(
        linear_kernel,
        out_shape=jax.ShapeDtypeStruct((B, N_CLASSES), x.dtype),
        grid_spec=pltpu.PrefetchScalarGridSpec(
            num_scalar_prefetch=0,
            grid=grid,
            in_specs=[
                # x: streamed in TB-row tiles, double-buffered by Pallas.
                pl.BlockSpec((TB, IN_FEATURES), lambda i: (i, 0)),
                # weight: tiny, constant across grid steps.
                pl.BlockSpec((IN_FEATURES, N_CLASSES), lambda i: (0, 0)),
                # bias: (1, 3), constant across grid steps.
                pl.BlockSpec((1, N_CLASSES), lambda i: (0, 0)),
            ],
            out_specs=pl.BlockSpec((TB, N_CLASSES), lambda i: (i, 0)),
        ),
        compiler_params=pltpu.CompilerParams(
            # Batch tiles are independent -> shard across TCs on v7x.
            dimension_semantics=("parallel",),
            # 2 x 8 MiB x buffers + 2 x 4 MiB lane-padded out buffers + small
            # weight/bias ~= 25 MiB at TB=8192; 32 MiB fits every generation
            # (and raises v5e's 16 MiB scoped default).
            vmem_limit_bytes=32 * 1024 * 1024,
        ),
        cost_estimate=cost,
    )(x, w, b2d)

    return out


if __name__ == "__main__":
    key = jax.random.PRNGKey(0)
    kx, kw, kb, kx2 = jax.random.split(key, 4)

    # Deterministic PyTorch-like init: U(-1/sqrt(in), 1/sqrt(in))
    bound = 1.0 / (IN_FEATURES ** 0.5)
    w = jax.random.uniform(kw, (IN_FEATURES, N_CLASSES),
                           minval=-bound, maxval=bound, dtype=jnp.float32)
    b = jax.random.uniform(kb, (N_CLASSES,),
                           minval=-bound, maxval=bound, dtype=jnp.float32)

    # Small, aligned batch.
    batch = 8
    x = jax.random.normal(kx, (batch, IN_FEATURES), dtype=jnp.float32)
    out = jax.block_until_ready(linear_model(x, w, b))
    ref = x @ w + b
    assert out.shape == (batch, N_CLASSES)
    assert jnp.allclose(out, ref, atol=1e-5, rtol=1e-5)

    # Non-multiple-of-8 batch exercising the ragged last block (no jnp.pad,
    # Pallas clips the out-of-bounds rows of the final tile on write).
    batch2 = 20
    x2 = jax.random.normal(kx2, (batch2, IN_FEATURES), dtype=jnp.float32)
    out2 = jax.block_until_ready(linear_model(x2, w, b))
    ref2 = x2 @ w + b
    assert out2.shape == (batch2, N_CLASSES)
    assert jnp.allclose(out2, ref2, atol=1e-5, rtol=1e-5)

    print("KERNEL_OK")
</pallas_src>

<mosaic_0001>
module attributes {stable_mosaic.version = 11 : i64} {
  func.func @linear_kernel(%arg0: i32, %arg1: memref<8x256xf32, #tpu.memory_space<vmem>>, %arg2: memref<256x3xf32, #tpu.memory_space<vmem>>, %arg3: memref<1x3xf32, #tpu.memory_space<vmem>>, %arg4: memref<8x3xf32, #tpu.memory_space<vmem>>) attributes {dimension_semantics = [#tpu.dimension_semantics<parallel>], iteration_bounds = array<i64: 1>, scalar_prefetch = 0 : i64, scratch_operands = 0 : i64, tpu.core_type = #tpu.core_type<tc>, window_params = [{transform_indices = @transform_0, window_bounds = array<i64: 8, 256>}, {pipeline_mode = #tpu.pipeline_mode<synchronous>, transform_indices = @transform_1, window_bounds = array<i64: 256, 3>}, {pipeline_mode = #tpu.pipeline_mode<synchronous>, transform_indices = @transform_2, window_bounds = array<i64: 1, 3>}, {transform_indices = @transform_3, window_bounds = array<i64: 8, 3>}]} {
    %c0 = arith.constant 0 : index
    %c0_0 = arith.constant 0 : index
    %0 = vector.load %arg1[%c0, %c0_0] : memref<8x256xf32, #tpu.memory_space<vmem>>, vector<8x256xf32>
    %c0_1 = arith.constant 0 : index
    %c0_2 = arith.constant 0 : index
    %1 = vector.load %arg2[%c0_1, %c0_2] : memref<256x3xf32, #tpu.memory_space<vmem>>, vector<256x3xf32>
    %cst = arith.constant dense<0.000000e+00> : vector<8x3xf32>
    %2 = tpu.matmul %0, %1, %cst {dimension_numbers = #tpu.dot_dimension_numbers<[1], [0], [0], [1], [0, 0, 1, 1], [], []>} : vector<8x256xf32>, vector<256x3xf32>, vector<8x3xf32> -> vector<8x3xf32>
    %c0_3 = arith.constant 0 : index
    %c0_4 = arith.constant 0 : index
    %3 = vector.load %arg3[%c0_3, %c0_4] : memref<1x3xf32, #tpu.memory_space<vmem>>, vector<1x3xf32>
    %4 = vector.broadcast %3 : vector<1x3xf32> to vector<8x3xf32>
    %5 = arith.addf %2, %4 : vector<8x3xf32>
    %c0_5 = arith.constant 0 : index
    %c0_6 = arith.constant 0 : index
    %6 = vector.load %arg4[%c0_5, %c0_6] : memref<8x3xf32, #tpu.memory_space<vmem>>, vector<8x3xf32>
    tpu.vector_store %arg4[%c0_5, %c0_6], %5 {strides = array<i32>} : memref<8x3xf32, #tpu.memory_space<vmem>>, vector<8x3xf32>,
    return
  }
  func.func @transform_0(%arg0: i32) -> (i32, i32) {
    %c0_i32 = arith.constant 0 : i32
    %c0_i32_0 = arith.constant 0 : i32
    return %arg0, %c0_i32 : i32, i32
  }
  func.func @transform_1(%arg0: i32) -> (i32, i32) {
    %c0_i32 = arith.constant 0 : i32
    %c0_i32_0 = arith.constant 0 : i32
    %c0_i32_1 = arith.constant 0 : i32
    return %c0_i32, %c0_i32_0 : i32, i32
  }
  func.func @transform_2(%arg0: i32) -> (i32, i32) {
    %c0_i32 = arith.constant 0 : i32
    %c0_i32_0 = arith.constant 0 : i32
    %c0_i32_1 = arith.constant 0 : i32
    return %c0_i32, %c0_i32_0 : i32, i32
  }
  func.func @transform_3(%arg0: i32) -> (i32, i32) {
    %c0_i32 = arith.constant 0 : i32
    %c0_i32_0 = arith.constant 0 : i32
    return %arg0, %c0_i32 : i32, i32
  }
}

</mosaic_0001>

<llo_original>
// kernel: tpu_custom_call.1
$region0: #{tpu_custom_call.1}
  #allocation0 [shape = 'u32[]', space=smem, size = 0x4, offset = 0x4, fixed_abs, tag = 'smem constant byte address 0x4 - core index']
  #allocation1 [shape = 'u32[144,128]{1,0:T(1,128)}', space=vmem, size = 0x12000, scoped, tag = 'internal scratch']
  %s0 = inlined_call_operand.vmem [shape: f32[8,256], index: 0, kind: input, shape index: {}]
  %s1 = inlined_call_operand.vmem [shape: f32[256,3], index: 1, kind: input, shape index: {}]
  %s2 = inlined_call_operand.vmem [shape: f32[1,3], index: 2, kind: input, shape index: {}]
  %s3 = inlined_call_operand.vmem [shape: f32[8,3], index: 3, kind: output, shape index: {}]
  %s4 = sld [smem:[#allocation0]]
  $region22: #{tpu_custom_call.1} parent=0
    _
  %s6 = ssub.s32 1, %s4
  %s7 = scalar_select 0, %s6, %s4
  // Predicated region
  $region2: #{tpu_custom_call.1} parent=0 // pred_check
    _
  $region3: #{tpu_custom_call.1} parent=0 // pred_check_branch
    %9 = sbr.rel (0) target = $region5
  $region4: #{tpu_custom_call.1} parent=0 // pred_region
    _
  $region5: #{tpu_custom_call.1} parent=0 // pred_fallthru
    _
  // Predicated region
  $region6: #{tpu_custom_call.1} parent=0 // pred_check
    _
  $region7: #{tpu_custom_call.1} parent=0 // pred_check_branch
    %11 = sbr.rel (0) target = $region9
  $region8: #{tpu_custom_call.1} parent=0 // pred_region
    _
  $region9: #{tpu_custom_call.1} parent=0 // pred_fallthru
    _
  // Predicated region
  $region10: #{tpu_custom_call.1} parent=0 // pred_check
    _
  $region11: #{tpu_custom_call.1} parent=0 // pred_check_branch
    %13 = sbr.rel (0) target = $region13
  $region12: #{tpu_custom_call.1} parent=0 // pred_region
    _
  $region13: #{tpu_custom_call.1} parent=0 // pred_fallthru
    _
  %v14 = vld [vmem:[%s0] sm:$0xff]
  %v15 = vld [vmem:[%s0 + $0x8] sm:$0xff]
  %v16 = vld [vmem:[%s1] sm:$0xff]
  %v17 = vld [vmem:[%s1 + $0x8] sm:$0xff]
  %v18 = vld [vmem:[%s1 + $0x10] sm:$0xff]
  %v19 = vld [vmem:[%s1 + $0x18] sm:$0xff]
  %v20 = vld [vmem:[%s1 + $0x20] sm:$0xff]
  %v21 = vld [vmem:[%s1 + $0x28] sm:$0xff]
  %v22 = vld [vmem:[%s1 + $0x30] sm:$0xff]
  %v23 = vld [vmem:[%s1 + $0x38] sm:$0xff]
  %v24 = vld [vmem:[%s1 + $0x40] sm:$0xff]
  %v25 = vld [vmem:[%s1 + $0x48] sm:$0xff]
  %v26 = vld [vmem:[%s1 + $0x50] sm:$0xff]
  %v27 = vld [vmem:[%s1 + $0x58] sm:$0xff]
  %v28 = vld [vmem:[%s1 + $0x60] sm:$0xff]
  %v29 = vld [vmem:[%s1 + $0x68] sm:$0xff]
  %v30 = vld [vmem:[%s1 + $0x70] sm:$0xff]
  %v31 = vld [vmem:[%s1 + $0x78] sm:$0xff]
  %v32 = vld [vmem:[%s1 + $0x80] sm:$0xff]
  %v33 = vld [vmem:[%s1 + $0x88] sm:$0xff]
  %v34 = vld [vmem:[%s1 + $0x90] sm:$0xff]
  %v35 = vld [vmem:[%s1 + $0x98] sm:$0xff]
  %v36 = vld [vmem:[%s1 + $0xa0] sm:$0xff]
  %v37 = vld [vmem:[%s1 + $0xa8] sm:$0xff]
  %v38 = vld [vmem:[%s1 + $0xb0] sm:$0xff]
  %v39 = vld [vmem:[%s1 + $0xb8] sm:$0xff]
  %v40 = vld [vmem:[%s1 + $0xc0] sm:$0xff]
  %v41 = vld [vmem:[%s1 + $0xc8] sm:$0xff]
  %v42 = vld [vmem:[%s1 + $0xd0] sm:$0xff]
  %v43 = vld [vmem:[%s1 + $0xd8] sm:$0xff]
  %v44 = vld [vmem:[%s1 + $0xe0] sm:$0xff]
  %v45 = vld [vmem:[%s1 + $0xe8] sm:$0xff]
  %v46 = vld [vmem:[%s1 + $0xf0] sm:$0xff]
  %v47 = vld [vmem:[%s1 + $0xf8] sm:$0xff]
  %v48 = vld [vmem:[%s2] sm:$0x1]
  %v50 = vlaneseq
  %v51 = vshrl.u32 %v50, 7
  %v52 = vsub.s32 0, %v51
  %v53 = vrot.slane %v48, %v52
  %55 = vmatprep.subr.mxu0 0.0
  %56 = vmatpush1.msra.mxu0 %v16
  %57 = vmatprep.subr.mxu0 0.0
  %58 = vmatpush1.msra.mxu0 %v17
  %59 = vmatprep.subr.mxu0 0.0
  %60 = vmatpush1.msra.mxu0 %v18
  %61 = vmatprep.subr.mxu0 0.0
  %62 = vmatpush1.msra.mxu0 %v19
  %63 = vmatprep.subr.mxu0 0.0
  %64 = vmatpush1.msra.mxu0 %v20
  %65 = vmatprep.subr.mxu0 0.0
  %66 = vmatpush1.msra.mxu0 %v21
  %67 = vmatprep.subr.mxu0 0.0
  %68 = vmatpush1.msra.mxu0 %v22
  %69 = vmatprep.subr.mxu0 0.0
  %70 = vmatpush1.msra.mxu0 %v23
  %71 = vmatprep.subr.mxu0 0.0
  %72 = vmatpush1.msra.mxu0 %v24
  %73 = vmatprep.subr.mxu0 0.0
  %74 = vmatpush1.msra.mxu0 %v25
  %75 = vmatprep.subr.mxu0 0.0
  %76 = vmatpush1.msra.mxu0 %v26
  %77 = vmatprep.subr.mxu0 0.0
  %78 = vmatpush1.msra.mxu0 %v27
  %79 = vmatprep.subr.mxu0 0.0
  %80 = vmatpush1.msra.mxu0 %v28
  %81 = vmatprep.subr.mxu0 0.0
  %82 = vmatpush1.msra.mxu0 %v29
  %83 = vmatprep.subr.mxu0 0.0
  %84 = vmatpush1.msra.mxu0 %v30
  %85 = vmatprep.subr.mxu0 0.0
  %86 = vmatpush1.msra.mxu0 %v31
  %87 = vmatprep.subr.mxu0 0.0
  %88 = vmatpush1.msra.mxu0 %v32
  %89 = vmatprep.subr.mxu0 0.0
  %90 = vmatpush1.msra.mxu0 %v33
  %91 = vmatprep.subr.mxu0 0.0
  %92 = vmatpush1.msra.mxu0 %v34
  %93 = vmatprep.subr.mxu0 0.0
  %94 = vmatpush1.msra.mxu0 %v35
  %95 = vmatprep.subr.mxu0 0.0
  %96 = vmatpush1.msra.mxu0 %v36
  %97 = vmatprep.subr.mxu0 0.0
  %98 = vmatpush1.msra.mxu0 %v37
  %99 = vmatprep.subr.mxu0 0.0
  %100 = vmatpush1.msra.mxu0 %v38
  %101 = vmatprep.subr.mxu0 0.0
  %102 = vmatpush1.msra.mxu0 %v39
  %103 = vmatprep.subr.mxu0 0.0
  %104 = vmatpush1.msra.mxu0 %v40
  %105 = vmatprep.subr.mxu0 0.0
  %106 = vmatpush1.msra.mxu0 %v41
  %107 = vmatprep.subr.mxu0 0.0
  %108 = vmatpush1.msra.mxu0 %v42
  %109 = vmatprep.subr.mxu0 0.0
  %110 = vmatpush1.msra.mxu0 %v43
  %111 = vmatprep.subr.mxu0 0.0
  %112 = vmatpush1.msra.mxu0 %v44
  %113 = vmatprep.subr.mxu0 0.0
  %114 = vmatpush1.msra.mxu0 %v45
  %115 = vmatprep.subr.mxu0 0.0
  %116 = vmatpush1.msra.mxu0 %v46
  %117 = vmatprep.subr.mxu0 0.0
  %118 = vmatpush1.msra.mxu0 %v47
  %119 = vmatprep.mubr.f32.mxu0 %v15
  %120 = vmatmul.mubr.f32.gmra.mrb[0].mxu0 %v14
  %v121 = vpop.f32.mrb[0].mxu0
  %v122 = vadd.f32 %v53, %v121
  %v123 = vpop.f32.mrb[0].mxu0
  %124 = vdwg.mxu0
  %vm125 = vcmask 23552
  %126 = vst.msk [vmem:[%s3] sm:$0xff] %vm125, %v122
  // Predicated region
  $region14: #{tpu_custom_call.1} parent=0 // pred_check
    _
  $region15: #{tpu_custom_call.1} parent=0 // pred_check_branch
    %128 = sbr.rel (0) target = $region17
  $region16: #{tpu_custom_call.1} parent=0 // pred_region
    _
  $region17: #{tpu_custom_call.1} parent=0 // pred_fallthru
    _
  // Predicated region
  $region18: #{tpu_custom_call.1} parent=0 // pred_check
    _
  $region19: #{tpu_custom_call.1} parent=0 // pred_check_branch
    %130 = sbr.rel (0) target = $region21
  $region20: #{tpu_custom_call.1} parent=0 // pred_region
    _
  $region21: #{tpu_custom_call.1} parent=0 // pred_fallthru
    _

</llo_original>
